<compile_context>
chip_gen: v7x
topology: tpu7x:2x2x1
jax: 0.10.0
libtpu: 0.0.40
codegen_flags: <defaults>
</compile_context>

<pallas_src>
import functools

import jax
import jax.numpy as jnp
from jax import lax
from jax.experimental import pallas as pl
from jax.experimental.pallas import tpu as pltpu


# --------------------------------------------------------------------------- #
# Pallas kernel: per batch-tile instance norm + conditional affine
# --------------------------------------------------------------------------- #
def cond_in_kernel(x_ref, s_ref, b_ref, o_ref, *, eps):
    """One batch tile.

    x_ref : (TB, CH, L)  activations
    s_ref : (TB, CH, 1)  conditional scale  (precomputed: scale(c))
    b_ref : (TB, CH, 1)  conditional bias   (precomputed: bias(c))
    o_ref : (TB, CH, L)  output
    """
    x = x_ref[...].astype(jnp.float32)
    l = x.shape[-1]
    inv_l = 1.0 / float(l)

    # ---- fused one-pass statistics over L (biased var, eps outside sqrt) ----
    mean = jnp.sum(x, axis=-1, keepdims=True) * inv_l             # E[x]
    ex2 = jnp.sum(x * x, axis=-1, keepdims=True) * inv_l          # E[x^2]
    var = jnp.maximum(ex2 - mean * mean, 0.0)                     # clamp >= 0
    inv = lax.rsqrt(var + eps)                                    # EUP slot

    # ---- fold norm + conditional affine into a single x*scale + shift pass --
    # (x - mean) * inv * s + b  ==  x * (inv*s) + (b - mean*inv*s)
    scale = s_ref[...].astype(jnp.float32) * inv                  # (TB, CH, 1)
    shift = b_ref[...].astype(jnp.float32) - mean * scale         # (TB, CH, 1)
    o_ref[...] = (x * scale + shift).astype(o_ref.dtype)


# --------------------------------------------------------------------------- #
# Wrapper
# --------------------------------------------------------------------------- #
def cond_instance_norm1d(x, c, params, *, eps=1e-5, block_batch=8):
    """x: (B, CH, L), c: (B, 2*cls_num) -> (B, CH, L)."""
    sw, sb, bw, bb = params
    B, CH, L = x.shape

    # --- hoisted conditional Linears: one batched GEMM each for the whole B --
    s = c @ sw.T + sb                                             # (B, CH)
    b = c @ bw.T + bb                                             # (B, CH)

    # --- tile the batch: TB rows per grid step -------------------------------
    tb = max(1, min(block_batch, B))
    n_tiles = pl.cdiv(B, tb)
    Bp = n_tiles * tb
    if Bp != B:  # pad batch to a whole number of tiles (sliced off below)
        x = jnp.pad(x, ((0, Bp - B), (0, 0), (0, 0)))
        s = jnp.pad(s, ((0, Bp - B), (0, 0)))
        b = jnp.pad(b, ((0, Bp - B), (0, 0)))
    s3 = s.reshape(Bp, CH, 1).astype(jnp.float32)
    b3 = b.reshape(Bp, CH, 1).astype(jnp.float32)

    # --- VMEM budget: double-buffered in+out blocks + small scale/bias -------
    itemsize = jnp.dtype(x.dtype).itemsize
    blk_bytes = tb * CH * L * itemsize
    needed = 2 * (2 * blk_bytes + 2 * tb * CH * 4) + (2 << 20)
    cp_kwargs = dict(dimension_semantics=("parallel",))           # v7x: 2 TCs
    if needed > (16 << 20):                                       # v5e default
        cp_kwargs["vmem_limit_bytes"] = int(min(needed, 64 << 20))

    out = pl.pallas_call(
        functools.partial(cond_in_kernel, eps=eps),
        out_shape=jax.ShapeDtypeStruct((Bp, CH, L), x.dtype),
        grid_spec=pltpu.PrefetchScalarGridSpec(
            num_scalar_prefetch=0,
            grid=(n_tiles,),
            in_specs=[
                pl.BlockSpec((tb, CH, L), lambda i: (i, 0, 0)),
                pl.BlockSpec((tb, CH, 1), lambda i: (i, 0, 0)),
                pl.BlockSpec((tb, CH, 1), lambda i: (i, 0, 0)),
            ],
            out_specs=pl.BlockSpec((tb, CH, L), lambda i: (i, 0, 0)),
        ),
        compiler_params=pltpu.CompilerParams(**cp_kwargs),
    )(x, s3, b3)

    return out[:B]


# --------------------------------------------------------------------------- #
# Deterministic parameter init (per ConditionalInstanceNorm1d.__init__)
# --------------------------------------------------------------------------- #
def init_params(key, ch, cls_num):
    k1, k2, k3, k4 = jax.random.split(key, 4)
    fan_in = cls_num * 2
    xav = (6.0 / (fan_in + ch)) ** 0.5                            # xavier_uniform
    sw = jax.random.uniform(k1, (ch, fan_in), jnp.float32, -xav, xav)
    bw = jax.random.uniform(k2, (ch, fan_in), jnp.float32, -xav, xav)
    lbound = 1.0 / fan_in ** 0.5                                  # default bias init
    sb = jax.random.uniform(k3, (ch,), jnp.float32, -lbound, lbound)
    bb = jax.random.uniform(k4, (ch,), jnp.float32, -lbound, lbound)
    return sw, sb, bw, bb


# --------------------------------------------------------------------------- #
# Pure-JAX reference (mirrors the PyTorch forward)
# --------------------------------------------------------------------------- #
def ref_forward(x, c, params, *, eps=1e-5):
    sw, sb, bw, bb = params
    mean = x.mean(axis=2, keepdims=True)
    var = ((x - mean) ** 2).mean(axis=2, keepdims=True)           # biased
    h = (x - mean) / jnp.sqrt(var + eps)
    s = c @ sw.T + sb
    b = c @ bw.T + bb
    return h * s[:, :, None] + b[:, :, None]


# --------------------------------------------------------------------------- #
if __name__ == "__main__":
    B, ch, cls_num, L = 4, 16, 4, 256                             # L lane-dense

    key = jax.random.PRNGKey(0)
    kx, kc, kp = jax.random.split(key, 3)
    x = jax.random.normal(kx, (B, ch, L), jnp.float32)
    c = jax.random.normal(kc, (B, cls_num * 2), jnp.float32)
    params = init_params(kp, ch, cls_num)

    out = cond_instance_norm1d(x, c, params)
    out = jax.block_until_ready(out)

    ref = ref_forward(x, c, params)
    assert out.shape == (B, ch, L)
    assert jnp.allclose(out, ref, rtol=1e-4, atol=1e-4), "mismatch vs JAX reference"

    print("KERNEL_OK")
</pallas_src>

<mosaic_0001>
module attributes {stable_mosaic.version = 11 : i64} {
  func.func @cond_in_kernel(%arg0: i32, %arg1: memref<4x16x256xf32, #tpu.memory_space<vmem>>, %arg2: memref<4x16x1xf32, #tpu.memory_space<vmem>>, %arg3: memref<4x16x1xf32, #tpu.memory_space<vmem>>, %arg4: memref<4x16x256xf32, #tpu.memory_space<vmem>>) attributes {dimension_semantics = [#tpu.dimension_semantics<parallel>], iteration_bounds = array<i64: 1>, scalar_prefetch = 0 : i64, scratch_operands = 0 : i64, tpu.core_type = #tpu.core_type<tc>, window_params = [{transform_indices = @transform_0, window_bounds = array<i64: 4, 16, 256>}, {transform_indices = @transform_1, window_bounds = array<i64: 4, 16, 1>}, {transform_indices = @transform_2, window_bounds = array<i64: 4, 16, 1>}, {transform_indices = @transform_3, window_bounds = array<i64: 4, 16, 256>}]} {
    %c0 = arith.constant 0 : index
    %c0_0 = arith.constant 0 : index
    %c0_1 = arith.constant 0 : index
    %0 = vector.load %arg1[%c0, %c0_0, %c0_1] : memref<4x16x256xf32, #tpu.memory_space<vmem>>, vector<4x16x256xf32>
    %cst = arith.constant dense<0.000000e+00> : vector<4x16xf32>
    %1 = vector.multi_reduction <add>, %0, %cst [2] : vector<4x16x256xf32> to vector<4x16xf32>
    %2 = vector.shape_cast %1 : vector<4x16xf32> to vector<4x16x1xf32>
    %cst_2 = arith.constant 3.906250e-03 : f32
    %3 = vector.broadcast %cst_2 : f32 to vector<4x16x1xf32>
    %4 = arith.mulf %2, %3 : vector<4x16x1xf32>
    %5 = arith.mulf %0, %0 : vector<4x16x256xf32>
    %cst_3 = arith.constant dense<0.000000e+00> : vector<4x16xf32>
    %6 = vector.multi_reduction <add>, %5, %cst_3 [2] : vector<4x16x256xf32> to vector<4x16xf32>
    %7 = vector.shape_cast %6 : vector<4x16xf32> to vector<4x16x1xf32>
    %cst_4 = arith.constant 3.906250e-03 : f32
    %8 = vector.broadcast %cst_4 : f32 to vector<4x16x1xf32>
    %9 = arith.mulf %7, %8 : vector<4x16x1xf32>
    %10 = arith.mulf %4, %4 : vector<4x16x1xf32>
    %11 = arith.subf %9, %10 : vector<4x16x1xf32>
    %cst_5 = arith.constant 0.000000e+00 : f32
    %12 = vector.broadcast %cst_5 : f32 to vector<4x16x1xf32>
    %13 = arith.maximumf %11, %12 : vector<4x16x1xf32>
    %cst_6 = arith.constant 9.99999974E-6 : f32
    %14 = vector.broadcast %cst_6 : f32 to vector<4x16x1xf32>
    %15 = arith.addf %13, %14 : vector<4x16x1xf32>
    %16 = math.rsqrt %15 : vector<4x16x1xf32>
    %c0_7 = arith.constant 0 : index
    %c0_8 = arith.constant 0 : index
    %c0_9 = arith.constant 0 : index
    %17 = vector.load %arg2[%c0_7, %c0_8, %c0_9] : memref<4x16x1xf32, #tpu.memory_space<vmem>>, vector<4x16x1xf32>
    %18 = arith.mulf %17, %16 : vector<4x16x1xf32>
    %c0_10 = arith.constant 0 : index
    %c0_11 = arith.constant 0 : index
    %c0_12 = arith.constant 0 : index
    %19 = vector.load %arg3[%c0_10, %c0_11, %c0_12] : memref<4x16x1xf32, #tpu.memory_space<vmem>>, vector<4x16x1xf32>
    %20 = arith.mulf %4, %18 : vector<4x16x1xf32>
    %21 = arith.subf %19, %20 : vector<4x16x1xf32>
    %22 = vector.broadcast %18 : vector<4x16x1xf32> to vector<4x16x256xf32>
    %23 = arith.mulf %0, %22 : vector<4x16x256xf32>
    %24 = vector.broadcast %21 : vector<4x16x1xf32> to vector<4x16x256xf32>
    %25 = arith.addf %23, %24 : vector<4x16x256xf32>
    %c0_13 = arith.constant 0 : index
    %c0_14 = arith.constant 0 : index
    %c0_15 = arith.constant 0 : index
    %26 = vector.load %arg4[%c0_13, %c0_14, %c0_15] : memref<4x16x256xf32, #tpu.memory_space<vmem>>, vector<4x16x256xf32>
    tpu.vector_store %arg4[%c0_13, %c0_14, %c0_15], %25 {strides = array<i32>} : memref<4x16x256xf32, #tpu.memory_space<vmem>>, vector<4x16x256xf32>,
    return
  }
  func.func @transform_0(%arg0: i32) -> (i32, i32, i32) {
    %c0_i32 = arith.constant 0 : i32
    %c0_i32_0 = arith.constant 0 : i32
    %c0_i32_1 = arith.constant 0 : i32
    return %arg0, %c0_i32, %c0_i32_0 : i32, i32, i32
  }
  func.func @transform_1(%arg0: i32) -> (i32, i32, i32) {
    %c0_i32 = arith.constant 0 : i32
    %c0_i32_0 = arith.constant 0 : i32
    %c0_i32_1 = arith.constant 0 : i32
    return %arg0, %c0_i32, %c0_i32_0 : i32, i32, i32
  }
  func.func @transform_2(%arg0: i32) -> (i32, i32, i32) {
    %c0_i32 = arith.constant 0 : i32
    %c0_i32_0 = arith.constant 0 : i32
    %c0_i32_1 = arith.constant 0 : i32
    return %arg0, %c0_i32, %c0_i32_0 : i32, i32, i32
  }
  func.func @transform_3(%arg0: i32) -> (i32, i32, i32) {
    %c0_i32 = arith.constant 0 : i32
    %c0_i32_0 = arith.constant 0 : i32
    %c0_i32_1 = arith.constant 0 : i32
    return %arg0, %c0_i32, %c0_i32_0 : i32, i32, i32
  }
}

</mosaic_0001>

<llo_original>
// kernel: tpu_custom_call.1
$region0: #{tpu_custom_call.1}
  #allocation0 [shape = 'u32[]', space=smem, size = 0x4, offset = 0x4, fixed_abs, tag = 'smem constant byte address 0x4 - core index']
  #allocation1 [shape = 'u32[144,128]{1,0:T(1,128)}', space=vmem, size = 0x12000, scoped, tag = 'internal scratch']
  %s0 = inlined_call_operand.vmem [shape: f32[4,16,256], index: 0, kind: input, shape index: {}]
  %s1 = inlined_call_operand.vmem [shape: f32[4,16,1], index: 1, kind: input, shape index: {}]
  %s2 = inlined_call_operand.vmem [shape: f32[4,16,1], index: 2, kind: input, shape index: {}]
  %s3 = inlined_call_operand.hbm [shape: f32[4,16,256], index: 3, kind: output, shape index: {}]
  %s4 = sld [smem:[#allocation0]]
  $region22: #{tpu_custom_call.1} parent=0
    _
  %s6 = ssub.s32 1, %s4
  %s7 = scalar_select 0, %s6, %s4
  $region1: #{tpu_custom_call.1} parent=0
    #allocation2 [shape = 'u8[65536]{0}', space=vmem, size = 0x10000, scoped, tag = 'output window, operand 0, single buffered']
    #allocation3 [shape = 's32[1]{0}', space=sflag, size = 0x4, scoped, tag = 'scoped memory for tpu_custom_call.1']
    %8 = vsyncpa [#allocation3], 0
    // Predicated region
    $region2: #{tpu_custom_call.1} parent=1 // pred_check
      _
    $region3: #{tpu_custom_call.1} parent=1 // pred_check_branch
      %10 = sbr.rel (0) target = $region5
    $region4: #{tpu_custom_call.1} parent=1 // pred_region
      _
    $region5: #{tpu_custom_call.1} parent=1 // pred_fallthru
      _
    // Predicated region
    $region6: #{tpu_custom_call.1} parent=1 // pred_check
      _
    $region7: #{tpu_custom_call.1} parent=1 // pred_check_branch
      %12 = sbr.rel (0) target = $region9
    $region8: #{tpu_custom_call.1} parent=1 // pred_region
      _
    $region9: #{tpu_custom_call.1} parent=1 // pred_fallthru
      _
    // Predicated region
    $region10: #{tpu_custom_call.1} parent=1 // pred_check
      _
    $region11: #{tpu_custom_call.1} parent=1 // pred_check_branch
      %14 = sbr.rel (0) target = $region13
    $region12: #{tpu_custom_call.1} parent=1 // pred_region
      _
    $region13: #{tpu_custom_call.1} parent=1 // pred_fallthru
      _
    %v15 = vld [vmem:[%s0] sm:$0xff]
    %v16 = vld [vmem:[%s0 + $0x8] sm:$0xff]
    %v17 = vld [vmem:[%s0 + $0x10] sm:$0xff]
    %v18 = vld [vmem:[%s0 + $0x18] sm:$0xff]
    %v19 = vld [vmem:[%s0 + $0x20] sm:$0xff]
    %v20 = vld [vmem:[%s0 + $0x28] sm:$0xff]
    %v21 = vld [vmem:[%s0 + $0x30] sm:$0xff]
    %v22 = vld [vmem:[%s0 + $0x38] sm:$0xff]
    %v23 = vld [vmem:[%s0 + $0x40] sm:$0xff]
    %v24 = vld [vmem:[%s0 + $0x48] sm:$0xff]
    %v25 = vld [vmem:[%s0 + $0x50] sm:$0xff]
    %v26 = vld [vmem:[%s0 + $0x58] sm:$0xff]
    %v27 = vld [vmem:[%s0 + $0x60] sm:$0xff]
    %v28 = vld [vmem:[%s0 + $0x68] sm:$0xff]
    %v29 = vld [vmem:[%s0 + $0x70] sm:$0xff]
    %v30 = vld [vmem:[%s0 + $0x78] sm:$0xff]
    %v31 = vadd.f32 %v15, %v16
    %32 = vadd.xlane.f32.xlu0 %v31
    %v33 = vpop.xlane.xlu0 %32
    %v34 = vadd.f32 %v17, %v18
    %35 = vadd.xlane.f32.xlu0 %v34
    %v36 = vpop.xlane.xlu0 %35
    %v37 = vadd.f32 %v19, %v20
    %38 = vadd.xlane.f32.xlu0 %v37
    %v39 = vpop.xlane.xlu0 %38
    %v40 = vadd.f32 %v21, %v22
    %41 = vadd.xlane.f32.xlu0 %v40
    %v42 = vpop.xlane.xlu0 %41
    %v43 = vadd.f32 %v23, %v24
    %44 = vadd.xlane.f32.xlu0 %v43
    %v45 = vpop.xlane.xlu0 %44
    %v46 = vadd.f32 %v25, %v26
    %47 = vadd.xlane.f32.xlu0 %v46
    %v48 = vpop.xlane.xlu0 %47
    %v49 = vadd.f32 %v27, %v28
    %50 = vadd.xlane.f32.xlu0 %v49
    %v51 = vpop.xlane.xlu0 %50
    %v52 = vadd.f32 %v29, %v30
    %53 = vadd.xlane.f32.xlu0 %v52
    %v54 = vpop.xlane.xlu0 %53
    %v55 = vmul.f32 %v33, 0.00390625
    %v56 = vmul.f32 %v36, 0.00390625
    %v57 = vmul.f32 %v39, 0.00390625
    %v58 = vmul.f32 %v42, 0.00390625
    %v59 = vmul.f32 %v45, 0.00390625
    %v60 = vmul.f32 %v48, 0.00390625
    %v61 = vmul.f32 %v51, 0.00390625
    %v62 = vmul.f32 %v54, 0.00390625
    %v63 = vmul.f32 %v15, %v15
    %v64 = vmul.f32 %v16, %v16
    %v65 = vmul.f32 %v17, %v17
    %v66 = vmul.f32 %v18, %v18
    %v67 = vmul.f32 %v19, %v19
    %v68 = vmul.f32 %v20, %v20
    %v69 = vmul.f32 %v21, %v21
    %v70 = vmul.f32 %v22, %v22
    %v71 = vmul.f32 %v23, %v23
    %v72 = vmul.f32 %v24, %v24
    %v73 = vmul.f32 %v25, %v25
    %v74 = vmul.f32 %v26, %v26
    %v75 = vmul.f32 %v27, %v27
    %v76 = vmul.f32 %v28, %v28
    %v77 = vmul.f32 %v29, %v29
    %v78 = vmul.f32 %v30, %v30
    %v79 = vadd.f32 %v63, %v64
    %80 = vadd.xlane.f32.xlu0 %v79
    %v81 = vpop.xlane.xlu0 %80
    %v82 = vadd.f32 %v65, %v66
    %83 = vadd.xlane.f32.xlu0 %v82
    %v84 = vpop.xlane.xlu0 %83
    %v85 = vadd.f32 %v67, %v68
    %86 = vadd.xlane.f32.xlu0 %v85
    %v87 = vpop.xlane.xlu0 %86
    %v88 = vadd.f32 %v69, %v70
    %89 = vadd.xlane.f32.xlu0 %v88
    %v90 = vpop.xlane.xlu0 %89
    %v91 = vadd.f32 %v71, %v72
    %92 = vadd.xlane.f32.xlu0 %v91
    %v93 = vpop.xlane.xlu0 %92
    %v94 = vadd.f32 %v73, %v74
    %95 = vadd.xlane.f32.xlu0 %v94
    %v96 = vpop.xlane.xlu0 %95
    %v97 = vadd.f32 %v75, %v76
    %98 = vadd.xlane.f32.xlu0 %v97
    %v99 = vpop.xlane.xlu0 %98
    %v100 = vadd.f32 %v77, %v78
    %101 = vadd.xlane.f32.xlu0 %v100
    %v102 = vpop.xlane.xlu0 %101
    %v103 = vmul.f32 %v81, 0.00390625
    %v104 = vmul.f32 %v84, 0.00390625
    %v105 = vmul.f32 %v87, 0.00390625
    %v106 = vmul.f32 %v90, 0.00390625
    %v107 = vmul.f32 %v93, 0.00390625
    %v108 = vmul.f32 %v96, 0.00390625
    %v109 = vmul.f32 %v99, 0.00390625
    %v110 = vmul.f32 %v102, 0.00390625
    %v111 = vmul.f32 %v55, %v55
    %v112 = vmul.f32 %v56, %v56
    %v113 = vmul.f32 %v57, %v57
    %v114 = vmul.f32 %v58, %v58
    %v115 = vmul.f32 %v59, %v59
    %v116 = vmul.f32 %v60, %v60
    %v117 = vmul.f32 %v61, %v61
    %v118 = vmul.f32 %v62, %v62
    %v119 = vsub.f32 %v103, %v111
    %v120 = vsub.f32 %v104, %v112
    %v121 = vsub.f32 %v105, %v113
    %v122 = vsub.f32 %v106, %v114
    %v123 = vsub.f32 %v107, %v115
    %v124 = vsub.f32 %v108, %v116
    %v125 = vsub.f32 %v109, %v117
    %v126 = vsub.f32 %v110, %v118
    %v127 = vmax.f32 %v119, 0.0
    %v128 = vmax.f32 %v120, 0.0
    %v129 = vmax.f32 %v121, 0.0
    %v130 = vmax.f32 %v122, 0.0
    %v131 = vmax.f32 %v123, 0.0
    %v132 = vmax.f32 %v124, 0.0
    %v133 = vmax.f32 %v125, 0.0
    %v134 = vmax.f32 %v126, 0.0
    %v135 = vadd.f32 %v127, 1e-05
    %v136 = vadd.f32 %v128, 1e-05
    %v137 = vadd.f32 %v129, 1e-05
    %v138 = vadd.f32 %v130, 1e-05
    %v139 = vadd.f32 %v131, 1e-05
    %v140 = vadd.f32 %v132, 1e-05
    %v141 = vadd.f32 %v133, 1e-05
    %v142 = vadd.f32 %v134, 1e-05
    %v143 = vrsqrt.pop %v135
    %v144 = vrsqrt.pop %v136
    %v145 = vrsqrt.pop %v137
    %v146 = vrsqrt.pop %v138
    %v147 = vrsqrt.pop %v139
    %v148 = vrsqrt.pop %v140
    %v149 = vrsqrt.pop %v141
    %v150 = vrsqrt.pop %v142
    %v151 = vld [vmem:[%s1] sm:$0xff]
    %v152 = vld [vmem:[%s1 + $0x8] sm:$0xff]
    %v153 = vld [vmem:[%s1 + $0x10] sm:$0xff]
    %v154 = vld [vmem:[%s1 + $0x18] sm:$0xff]
    %v155 = vld [vmem:[%s1 + $0x20] sm:$0xff]
    %v156 = vld [vmem:[%s1 + $0x28] sm:$0xff]
    %v157 = vld [vmem:[%s1 + $0x30] sm:$0xff]
    %v158 = vld [vmem:[%s1 + $0x38] sm:$0xff]
    %v159 = vmul.f32 %v151, %v143
    %v160 = vmul.f32 %v152, %v144
    %v161 = vmul.f32 %v153, %v145
    %v162 = vmul.f32 %v154, %v146
    %v163 = vmul.f32 %v155, %v147
    %v164 = vmul.f32 %v156, %v148
    %v165 = vmul.f32 %v157, %v149
    %v166 = vmul.f32 %v158, %v150
    %v167 = vld [vmem:[%s2] sm:$0xff]
    %v168 = vld [vmem:[%s2 + $0x8] sm:$0xff]
    %v169 = vld [vmem:[%s2 + $0x10] sm:$0xff]
    %v170 = vld [vmem:[%s2 + $0x18] sm:$0xff]
    %v171 = vld [vmem:[%s2 + $0x20] sm:$0xff]
    %v172 = vld [vmem:[%s2 + $0x28] sm:$0xff]
    %v173 = vld [vmem:[%s2 + $0x30] sm:$0xff]
    %v174 = vld [vmem:[%s2 + $0x38] sm:$0xff]
    %v175 = vmul.f32 %v55, %v159
    %v176 = vmul.f32 %v56, %v160
    %v177 = vmul.f32 %v57, %v161
    %v178 = vmul.f32 %v58, %v162
    %v179 = vmul.f32 %v59, %v163
    %v180 = vmul.f32 %v60, %v164
    %v181 = vmul.f32 %v61, %v165
    %v182 = vmul.f32 %v62, %v166
    %v183 = vsub.f32 %v167, %v175
    %v184 = vsub.f32 %v168, %v176
    %v185 = vsub.f32 %v169, %v177
    %v186 = vsub.f32 %v170, %v178
    %v187 = vsub.f32 %v171, %v179
    %v188 = vsub.f32 %v172, %v180
    %v189 = vsub.f32 %v173, %v181
    %v190 = vsub.f32 %v174, %v182
    %192 = vset.pattern.permute.xlu0 0
    %193 = vperm.xlu0 %192, %v159
    %v194 = vpop.permute.xlu0 %193
    %197 = vset.pattern.permute.xlu0 0
    %198 = vperm.xlu0 %197, %v160
    %v199 = vpop.permute.xlu0 %198
    %202 = vset.pattern.permute.xlu0 0
    %203 = vperm.xlu0 %202, %v161
    %v204 = vpop.permute.xlu0 %203
    %207 = vset.pattern.permute.xlu0 0
    %208 = vperm.xlu0 %207, %v162
    %v209 = vpop.permute.xlu0 %208
    %212 = vset.pattern.permute.xlu0 0
    %213 = vperm.xlu0 %212, %v163
    %v214 = vpop.permute.xlu0 %213
    %217 = vset.pattern.permute.xlu0 0
    %218 = vperm.xlu0 %217, %v164
    %v219 = vpop.permute.xlu0 %218
    %222 = vset.pattern.permute.xlu0 0
    %223 = vperm.xlu0 %222, %v165
    %v224 = vpop.permute.xlu0 %223
    %227 = vset.pattern.permute.xlu0 0
    %228 = vperm.xlu0 %227, %v166
    %v229 = vpop.permute.xlu0 %228
    %v231 = vmul.f32 %v15, %v194
    %v232 = vmul.f32 %v16, %v194
    %v233 = vmul.f32 %v17, %v199
    %v234 = vmul.f32 %v18, %v199
    %v235 = vmul.f32 %v19, %v204
    %v236 = vmul.f32 %v20, %v204
    %v237 = vmul.f32 %v21, %v209
    %v238 = vmul.f32 %v22, %v209
    %v239 = vmul.f32 %v23, %v214
    %v240 = vmul.f32 %v24, %v214
    %v241 = vmul.f32 %v25, %v219
    %v242 = vmul.f32 %v26, %v219
    %v243 = vmul.f32 %v27, %v224
    %v244 = vmul.f32 %v28, %v224
    %v245 = vmul.f32 %v29, %v229
    %v246 = vmul.f32 %v30, %v229
    %248 = vset.pattern.permute.xlu0 0
    %249 = vperm.xlu0 %248, %v183
    %v250 = vpop.permute.xlu0 %249
    %253 = vset.pattern.permute.xlu0 0
    %254 = vperm.xlu0 %253, %v184
    %v255 = vpop.permute.xlu0 %254
    %258 = vset.pattern.permute.xlu0 0
    %259 = vperm.xlu0 %258, %v185
    %v260 = vpop.permute.xlu0 %259
    %263 = vset.pattern.permute.xlu0 0
    %264 = vperm.xlu0 %263, %v186
    %v265 = vpop.permute.xlu0 %264
    %268 = vset.pattern.permute.xlu0 0
    %269 = vperm.xlu0 %268, %v187
    %v270 = vpop.permute.xlu0 %269
    %273 = vset.pattern.permute.xlu0 0
    %274 = vperm.xlu0 %273, %v188
    %v275 = vpop.permute.xlu0 %274
    %278 = vset.pattern.permute.xlu0 0
    %279 = vperm.xlu0 %278, %v189
    %v280 = vpop.permute.xlu0 %279
    %283 = vset.pattern.permute.xlu0 0
    %284 = vperm.xlu0 %283, %v190
    %v285 = vpop.permute.xlu0 %284
    %v287 = vadd.f32 %v231, %v250
    %v288 = vadd.f32 %v232, %v250
    %v289 = vadd.f32 %v233, %v255
    %v290 = vadd.f32 %v234, %v255
    %v291 = vadd.f32 %v235, %v260
    %v292 = vadd.f32 %v236, %v260
    %v293 = vadd.f32 %v237, %v265
    %v294 = vadd.f32 %v238, %v265
    %v295 = vadd.f32 %v239, %v270
    %v296 = vadd.f32 %v240, %v270
    %v297 = vadd.f32 %v241, %v275
    %v298 = vadd.f32 %v242, %v275
    %v299 = vadd.f32 %v243, %v280
    %v300 = vadd.f32 %v244, %v280
    %v301 = vadd.f32 %v245, %v285
    %v302 = vadd.f32 %v246, %v285
    %303 = vst [vmem:[#allocation2] sm:$0xff] %v287
    %304 = vst [vmem:[#allocation2 + $0x8] sm:$0xff] %v288
    %305 = vst [vmem:[#allocation2 + $0x10] sm:$0xff] %v289
    %306 = vst [vmem:[#allocation2 + $0x18] sm:$0xff] %v290
    %307 = vst [vmem:[#allocation2 + $0x20] sm:$0xff] %v291
    %308 = vst [vmem:[#allocation2 + $0x28] sm:$0xff] %v292
    %309 = vst [vmem:[#allocation2 + $0x30] sm:$0xff] %v293
    %310 = vst [vmem:[#allocation2 + $0x38] sm:$0xff] %v294
    %311 = vst [vmem:[#allocation2 + $0x40] sm:$0xff] %v295
    %312 = vst [vmem:[#allocation2 + $0x48] sm:$0xff] %v296
    %313 = vst [vmem:[#allocation2 + $0x50] sm:$0xff] %v297
    %314 = vst [vmem:[#allocation2 + $0x58] sm:$0xff] %v298
    %315 = vst [vmem:[#allocation2 + $0x60] sm:$0xff] %v299
    %316 = vst [vmem:[#allocation2 + $0x68] sm:$0xff] %v300
    %317 = vst [vmem:[#allocation2 + $0x70] sm:$0xff] %v301
    %318 = vst [vmem:[#allocation2 + $0x78] sm:$0xff] %v302
    // Predicated region
    $region14: #{tpu_custom_call.1} parent=1 // pred_check
      _
    $region15: #{tpu_custom_call.1} parent=1 // pred_check_branch
      %320 = sbr.rel (0) target = $region17
    $region16: #{tpu_custom_call.1} parent=1 // pred_region
      %s322 = ssub.s32 2048, 2048
      %323 = vsyncadd [#allocation3], %s322
      %s324 = sshll.u32 [#allocation2], 4
      %s325 = int_to_ptr.vmem [resolvable:$true] %s324
      %330 = dma.vmem_to_hbm [thread:$0]  %s325, 2048, %s3, [#allocation3], 256, 256, 16
    $region17: #{tpu_custom_call.1} parent=1 // pred_fallthru
      _
    // Predicated region
    $region18: #{tpu_custom_call.1} parent=1 // pred_check
      _
    $region19: #{tpu_custom_call.1} parent=1 // pred_check_branch
      %332 = sbr.rel (0) target = $region21
    $region20: #{tpu_custom_call.1} parent=1 // pred_region
      %333 = dma.done [#allocation3], 2048
    $region21: #{tpu_custom_call.1} parent=1 // pred_fallthru
      _
    %334 = vsyncpa [#allocation3], 1

</llo_original>
